<compile_context>
chip_gen: v7x
topology: tpu7x:2x2x1
jax: 0.10.0
libtpu: 0.0.40
codegen_flags: <defaults>
</compile_context>

<pallas_src>
import functools

import jax
import jax.numpy as jnp
from jax.experimental import pallas as pl
from jax.experimental.pallas import tpu as pltpu


# ----------------------------------------------------------------------------
# helpers
# ----------------------------------------------------------------------------
def _round_up(a, b):
    return (a + b - 1) // b * b


def _round_down(a, b):
    return (a // b) * b


def _tpu_vmem_capacity_bytes():
    try:
        return int(pltpu.get_tpu_info().vmem_capacity_bytes)
    except Exception:
        return 64 * 1024 * 1024  # conservative: v7x physical VMEM per core


def _vmem_budget_bytes():
    # Keep the double-buffered pipeline working set to ~half of physical VMEM
    # (~32 MiB on v7x, ~64 MiB on v5e/v6e).
    return _tpu_vmem_capacity_bytes() // 2


def _vmem_limit_bytes():
    # Raise the scoped-VMEM limit above the 16/32 MiB defaults, keep headroom.
    return min(3 * _tpu_vmem_capacity_bytes() // 4, 100 * 1024 * 1024)


def _row_align(dtype):
    itemsize = jnp.dtype(dtype).itemsize
    return 8 if itemsize >= 4 else (16 if itemsize == 2 else 32)


def _make_activation(name):
    if name == "relu":
        return lambda v: jnp.maximum(v, 0.0)
    if name == "lrelu":
        return lambda v: jnp.where(v >= 0, v, 0.2 * v)
    if name == "tanh":
        return jnp.tanh
    if name == "none":
        return None
    raise ValueError(f"Unsupported activation: {name}")


# ----------------------------------------------------------------------------
# Kernel 1: conv as GEMM (patches @ W + b), fused activation
# ----------------------------------------------------------------------------
def _gemm_kernel(p_ref, w_ref, b_ref, o_ref, *, act_pre, act_post):
    p = p_ref[...].astype(jnp.float32)          # (TM, K)
    if act_pre is not None:                     # activation_first: act commutes
        p = act_pre(p)                          # with pad/im2col (act(0) == 0)
    acc = jnp.dot(p, w_ref[...].astype(jnp.float32),
                  preferred_element_type=jnp.float32)        # (TM, N)
    acc = acc + b_ref[...].astype(jnp.float32)               # (1, N) broadcast
    if act_post is not None:
        acc = act_post(acc)
    o_ref[...] = acc.astype(o_ref.dtype)


def _conv_gemm(patches, wmat, bias, *, act_pre=None, act_post=None):
    M, K = patches.shape
    _, N = wmat.shape
    itemsize = jnp.dtype(patches.dtype).itemsize
    ra = _row_align(patches.dtype)

    Mp = _round_up(M, ra)
    if Mp != M:
        patches = jnp.pad(patches, ((0, Mp - M), (0, 0)))

    # VMEM budget:  2 in + 2 out double-buffers of the (TM, *) tiles dominate;
    # weights/bias are fetched once (constant block index).
    budget = _vmem_budget_bytes()
    fixed = (K * N + N) * itemsize
    avail = max(0, budget - 2 * fixed)
    tm_cap = avail // max(1, 2 * (K + N) * itemsize)
    TM = min(Mp, max(ra, _round_down(tm_cap, ra)))
    if Mp >= 2 * ra:                              # >= 2 grid steps for megacore
        TM = min(TM, max(ra, _round_down(Mp // 2, ra)))
    grid = (pl.cdiv(Mp, TM),)

    out = pl.pallas_call(
        functools.partial(_gemm_kernel, act_pre=act_pre, act_post=act_post),
        out_shape=jax.ShapeDtypeStruct((Mp, N), patches.dtype),
        grid_spec=pltpu.PrefetchScalarGridSpec(
            num_scalar_prefetch=0,
            grid=grid,
            in_specs=[
                pl.BlockSpec((TM, K), lambda i: (i, 0)),
                pl.BlockSpec((K, N), lambda i: (0, 0)),
                pl.BlockSpec((1, N), lambda i: (0, 0)),
            ],
            out_specs=pl.BlockSpec((TM, N), lambda i: (i, 0)),
        ),
        compiler_params=pltpu.CompilerParams(
            dimension_semantics=("parallel",),
            vmem_limit_bytes=_vmem_limit_bytes(),
        ),
    )(patches, wmat, bias.reshape(1, N).astype(patches.dtype))

    return out[:M] if Mp != M else out


# ----------------------------------------------------------------------------
# Kernel 2: instance / AdaIN normalization (+ fused activation)
# ----------------------------------------------------------------------------
def _inorm_kernel(x_ref, wb_ref, o_ref, *, eps, hw_valid, act):
    x = x_ref[...].astype(jnp.float32)                     # (TR, HWp)
    hw_pad = x.shape[-1]
    inv_n = 1.0 / float(hw_valid)

    # padded lanes are zero, so the plain sum already gives the true sum
    mean = jnp.sum(x, axis=-1, keepdims=True) * inv_n      # (TR, 1)
    xc = x - mean
    if hw_pad != hw_valid:
        lane = jax.lax.broadcasted_iota(jnp.int32, x.shape, x.ndim - 1)
        xc_stat = jnp.where(lane < hw_valid, xc, 0.0)
    else:
        xc_stat = xc
    # mean-first (centered) variance kept for numerical safety
    var = jnp.sum(xc_stat * xc_stat, axis=-1, keepdims=True) * inv_n

    wb = wb_ref[...].astype(jnp.float32)                   # (TR, 2)
    w = wb[:, 0:1]
    b = wb[:, 1:2]
    scale = jax.lax.rsqrt(var + eps) * w                   # fold affine into
    shift = b - mean * scale                               # per-row scale/shift
    y = x * scale + shift
    if act is not None:
        y = act(y)
    o_ref[...] = y.astype(o_ref.dtype)


def _instance_affine_norm(x, weight, bias, *, eps=1e-5, act=None):
    """x: (B, C, H, W); weight, bias: (B*C,) f32.  Per-(b,c) normalization."""
    B, C, H, W = x.shape
    BC, HW = B * C, H * W
    assert weight.shape == (BC,) and bias.shape == (BC,)

    x2 = x.reshape(BC, HW)
    wb = jnp.stack([weight, bias], axis=1).astype(jnp.float32)   # (BC, 2)

    ra = _row_align(x.dtype)
    itemsize = jnp.dtype(x.dtype).itemsize
    BCp = _round_up(BC, ra)
    HWp = _round_up(HW, 128)               # lane-dense stores
    if (BCp, HWp) != (BC, HW):
        x2 = jnp.pad(x2, ((0, BCp - BC), (0, HWp - HW)))
    if BCp != BC:
        wb = jnp.pad(wb, ((0, BCp - BC), (0, 0)))

    # TR from VMEM budget: 2 input + 2 output double-buffers of (TR, HWp).
    budget = _vmem_budget_bytes()
    tr_cap = max(1, budget // (4 * HWp * itemsize))
    TR = min(BCp, max(ra, _round_down(tr_cap, ra)))
    if BCp >= 2 * ra:                      # >= 2 grid steps for v7x megacore
        TR = min(TR, max(ra, _round_down(BCp // 2, ra)))
    grid = (pl.cdiv(BCp, TR),)

    out2 = pl.pallas_call(
        functools.partial(_inorm_kernel, eps=eps, hw_valid=HW, act=act),
        out_shape=jax.ShapeDtypeStruct((BCp, HWp), x.dtype),
        grid_spec=pltpu.PrefetchScalarGridSpec(
            num_scalar_prefetch=0,
            grid=grid,
            in_specs=[
                pl.BlockSpec((TR, HWp), lambda i: (i, 0)),
                pl.BlockSpec((TR, 2), lambda i: (i, 0)),
            ],
            out_specs=pl.BlockSpec((TR, HWp), lambda i: (i, 0)),
        ),
        compiler_params=pltpu.CompilerParams(
            dimension_semantics=("parallel",),
            vmem_limit_bytes=_vmem_limit_bytes(),
        ),
    )(x2, wb)

    if (BCp, HWp) != (BC, HW):
        out2 = out2[:BC, :HW]
    return out2.reshape(B, C, H, W)


def adaptive_instance_norm_2d(x, weight, bias, *, eps=1e-5):
    """AdaptiveInstanceNorm2d forward.  x: (B,C,H,W); weight/bias: (B*C,)."""
    return _instance_affine_norm(x, weight, bias, eps=eps, act=None)


# ----------------------------------------------------------------------------
# Conv2dBlock forward
# ----------------------------------------------------------------------------
def conv2d_block(x, conv_weight, conv_bias=None, *, stride=1, padding=0,
                 pad_type="zero", norm="none", activation="relu",
                 activation_first=False, adain_weight=None, adain_bias=None,
                 eps=1e-5):
    """x: (B, Cin, H, W); conv_weight: (Cout, Cin, KH, KW); conv_bias: (Cout,)."""
    B, Cin, H, W = x.shape
    Cout, Cin_w, KH, KW = conv_weight.shape
    assert Cin_w == Cin
    act = _make_activation(activation)

    # --- pad (wrapper-side layout prep) ---
    if padding > 0:
        mode = {"zero": "constant", "reflect": "reflect", "replicate": "edge"}[pad_type]
        x = jnp.pad(x, ((0, 0), (0, 0), (padding, padding), (padding, padding)),
                    mode=mode)
    Hp, Wp = x.shape[2], x.shape[3]
    OH = (Hp - KH) // stride + 1
    OW = (Wp - KW) // stride + 1

    # --- im2col (wrapper-side layout prep): (B*OH*OW, KH*KW*Cin), NHWC order ---
    xn = jnp.transpose(x, (0, 2, 3, 1))
    cols = []
    for kh in range(KH):
        for kw in range(KW):
            cols.append(xn[:, kh:kh + (OH - 1) * stride + 1:stride,
                           kw:kw + (OW - 1) * stride + 1:stride, :])
    patches = jnp.concatenate(cols, axis=-1).reshape(B * OH * OW, KH * KW * Cin)
    wmat = jnp.transpose(conv_weight, (2, 3, 1, 0)).reshape(KH * KW * Cin, Cout)
    bias = conv_bias if conv_bias is not None else jnp.zeros((Cout,), x.dtype)

    # activation placement:
    #  - activation_first: act(x) commutes with pad / im2col (act(0)==0 for
    #    relu/lrelu/tanh), so it is fused onto the patch tile inside the GEMM.
    #  - otherwise it runs after the norm (fused there) or, if no norm, fused
    #    onto the GEMM output.
    fuse_post_act = (not activation_first) and (norm == "none")
    y2 = _conv_gemm(patches.astype(x.dtype), wmat.astype(x.dtype), bias,
                    act_pre=act if activation_first else None,
                    act_post=act if fuse_post_act else None)

    y = jnp.transpose(y2.reshape(B, OH, OW, Cout), (0, 3, 1, 2))   # NCHW

    if norm in ("in", "adain"):
        if norm == "adain":
            assert adain_weight is not None and adain_bias is not None, \
                "Please assign AdaIN weight first"
            w_n, b_n = adain_weight, adain_bias
        else:  # InstanceNorm2d default: affine=False
            w_n = jnp.ones((B * Cout,), jnp.float32)
            b_n = jnp.zeros((B * Cout,), jnp.float32)
        post = None if activation_first else act
        y = _instance_affine_norm(y, w_n, b_n, eps=eps, act=post)
    elif norm != "none":
        raise NotImplementedError(f"norm='{norm}' not implemented")
    return y


# ----------------------------------------------------------------------------
# pure-JAX references
# ----------------------------------------------------------------------------
def _reference_conv2d_block(x, w, b, *, stride, padding, pad_type, norm,
                            activation, activation_first, adain_w, adain_b,
                            eps=1e-5):
    act = _make_activation(activation)
    if activation_first and act is not None:
        x = act(x)
    if padding > 0:
        mode = {"zero": "constant", "reflect": "reflect", "replicate": "edge"}[pad_type]
        x = jnp.pad(x, ((0, 0), (0, 0), (padding, padding), (padding, padding)),
                    mode=mode)
    y = jax.lax.conv_general_dilated(
        x, w, (stride, stride), "VALID",
        dimension_numbers=("NCHW", "OIHW", "NCHW"),
        precision=jax.lax.Precision.HIGHEST)
    if b is not None:
        y = y + b[None, :, None, None]
    if norm in ("in", "adain"):
        B_, C_, H_, W_ = y.shape
        yf = y.reshape(B_ * C_, H_ * W_)
        mean = yf.mean(axis=1, keepdims=True)
        var = ((yf - mean) ** 2).mean(axis=1, keepdims=True)
        yf = (yf - mean) / jnp.sqrt(var + eps)
        if norm == "adain":
            yf = yf * adain_w[:, None] + adain_b[:, None]
        y = yf.reshape(B_, C_, H_, W_)
    if (not activation_first) and act is not None:
        y = act(y)
    return y


def _reference_adain(x, weight, bias, eps=1e-5):
    B, C, H, W = x.shape
    xf = x.reshape(B * C, H * W).astype(jnp.float32)
    mean = xf.mean(axis=1, keepdims=True)
    var = ((xf - mean) ** 2).mean(axis=1, keepdims=True)
    out = (xf - mean) / jnp.sqrt(var + eps)
    out = out * weight[:, None] + bias[:, None]
    return out.reshape(B, C, H, W).astype(x.dtype)


# ----------------------------------------------------------------------------
if __name__ == "__main__":
    key = jax.random.PRNGKey(0)
    k = jax.random.split(key, 6)
    B, Cin, Cout, H, W, KS = 2, 4, 8, 16, 16, 3

    x = jax.random.normal(k[0], (B, Cin, H, W), dtype=jnp.float32)
    conv_w = jax.random.normal(k[1], (Cout, Cin, KS, KS), dtype=jnp.float32) * 0.1
    conv_b = jax.random.normal(k[2], (Cout,), dtype=jnp.float32) * 0.1
    ada_w = jax.random.normal(k[3], (B * Cout,), dtype=jnp.float32) * 0.5 + 1.0
    ada_b = jax.random.normal(k[4], (B * Cout,), dtype=jnp.float32) * 0.1

    # Conv2dBlock(4, 8, 3, 1, padding=1, norm='adain', activation='relu', pad_type='zero')
    out1 = conv2d_block(x, conv_w, conv_b, stride=1, padding=1, pad_type="zero",
                        norm="adain", activation="relu",
                        adain_weight=ada_w, adain_bias=ada_b)
    out1 = jax.block_until_ready(out1)
    ref1 = _reference_conv2d_block(x, conv_w, conv_b, stride=1, padding=1,
                                   pad_type="zero", norm="adain",
                                   activation="relu", activation_first=False,
                                   adain_w=ada_w, adain_b=ada_b)
    assert out1.shape == (B, Cout, H, W)
    assert jnp.allclose(out1, ref1, atol=1e-3, rtol=1e-3), "adain path mismatch"

    # Conv2dBlock(4, 8, 3, 2, padding=1, norm='none', activation='lrelu', pad_type='reflect')
    out2 = conv2d_block(x, conv_w, conv_b, stride=2, padding=1,
                        pad_type="reflect", norm="none", activation="lrelu")
    out2 = jax.block_until_ready(out2)
    ref2 = _reference_conv2d_block(x, conv_w, conv_b, stride=2, padding=1,
                                   pad_type="reflect", norm="none",
                                   activation="lrelu", activation_first=False,
                                   adain_w=None, adain_b=None)
    assert out2.shape == ref2.shape
    assert jnp.allclose(out2, ref2, atol=1e-3, rtol=1e-3), "plain path mismatch"

    # Standalone AdaptiveInstanceNorm2d kernel check.
    xa = jax.random.normal(k[5], (B, Cout, H, W), dtype=jnp.float32)
    out3 = jax.block_until_ready(adaptive_instance_norm_2d(xa, ada_w, ada_b))
    ref3 = _reference_adain(xa, ada_w, ada_b)
    assert jnp.allclose(out3, ref3, atol=1e-4, rtol=1e-4), "adain kernel mismatch"

    print("KERNEL_OK")
</pallas_src>

<mosaic_0001>
module attributes {stable_mosaic.version = 11 : i64} {
  func.func @_gemm_kernel(%arg0: i32, %arg1: memref<256x36xf32, #tpu.memory_space<vmem>>, %arg2: memref<36x8xf32, #tpu.memory_space<vmem>>, %arg3: memref<1x8xf32, #tpu.memory_space<vmem>>, %arg4: memref<256x8xf32, #tpu.memory_space<vmem>>) attributes {dimension_semantics = [#tpu.dimension_semantics<parallel>], iteration_bounds = array<i64: 2>, scalar_prefetch = 0 : i64, scratch_operands = 0 : i64, tpu.core_type = #tpu.core_type<tc>, window_params = [{transform_indices = @transform_0, window_bounds = array<i64: 256, 36>}, {pipeline_mode = #tpu.pipeline_mode<synchronous>, transform_indices = @transform_1, window_bounds = array<i64: 36, 8>}, {pipeline_mode = #tpu.pipeline_mode<synchronous>, transform_indices = @transform_2, window_bounds = array<i64: 1, 8>}, {transform_indices = @transform_3, window_bounds = array<i64: 256, 8>}]} {
    %c0 = arith.constant 0 : index
    %c0_0 = arith.constant 0 : index
    %0 = vector.load %arg1[%c0, %c0_0] : memref<256x36xf32, #tpu.memory_space<vmem>>, vector<256x36xf32>
    %c0_1 = arith.constant 0 : index
    %c0_2 = arith.constant 0 : index
    %1 = vector.load %arg2[%c0_1, %c0_2] : memref<36x8xf32, #tpu.memory_space<vmem>>, vector<36x8xf32>
    %cst = arith.constant dense<0.000000e+00> : vector<256x8xf32>
    %2 = tpu.matmul %0, %1, %cst {dimension_numbers = #tpu.dot_dimension_numbers<[1], [0], [0], [1], [0, 0, 1, 1], [], []>} : vector<256x36xf32>, vector<36x8xf32>, vector<256x8xf32> -> vector<256x8xf32>
    %c0_3 = arith.constant 0 : index
    %c0_4 = arith.constant 0 : index
    %3 = vector.load %arg3[%c0_3, %c0_4] : memref<1x8xf32, #tpu.memory_space<vmem>>, vector<1x8xf32>
    %4 = vector.broadcast %3 : vector<1x8xf32> to vector<256x8xf32>
    %5 = arith.addf %2, %4 : vector<256x8xf32>
    %c0_5 = arith.constant 0 : index
    %c0_6 = arith.constant 0 : index
    %6 = vector.load %arg4[%c0_5, %c0_6] : memref<256x8xf32, #tpu.memory_space<vmem>>, vector<256x8xf32>
    tpu.vector_store %arg4[%c0_5, %c0_6], %5 {strides = array<i32>} : memref<256x8xf32, #tpu.memory_space<vmem>>, vector<256x8xf32>,
    return
  }
  func.func @transform_0(%arg0: i32) -> (i32, i32) {
    %c0_i32 = arith.constant 0 : i32
    %c0_i32_0 = arith.constant 0 : i32
    return %arg0, %c0_i32 : i32, i32
  }
  func.func @transform_1(%arg0: i32) -> (i32, i32) {
    %c0_i32 = arith.constant 0 : i32
    %c0_i32_0 = arith.constant 0 : i32
    %c0_i32_1 = arith.constant 0 : i32
    return %c0_i32, %c0_i32_0 : i32, i32
  }
  func.func @transform_2(%arg0: i32) -> (i32, i32) {
    %c0_i32 = arith.constant 0 : i32
    %c0_i32_0 = arith.constant 0 : i32
    %c0_i32_1 = arith.constant 0 : i32
    return %c0_i32, %c0_i32_0 : i32, i32
  }
  func.func @transform_3(%arg0: i32) -> (i32, i32) {
    %c0_i32 = arith.constant 0 : i32
    %c0_i32_0 = arith.constant 0 : i32
    return %arg0, %c0_i32 : i32, i32
  }
}

</mosaic_0001>

<llo_original>
// kernel: tpu_custom_call.1
$region0: #{tpu_custom_call.1}
  #allocation0 [shape = 'u32[]', space=smem, size = 0x4, offset = 0x4, fixed_abs, tag = 'smem constant byte address 0x4 - core index']
  #allocation1 [shape = 'u32[144,128]{1,0:T(1,128)}', space=vmem, size = 0x12000, scoped, tag = 'internal scratch']
  %s0 = inlined_call_operand.vmem [shape: f32[512,36], index: 0, kind: input, shape index: {}]
  %s1 = inlined_call_operand.vmem [shape: f32[36,8], index: 1, kind: input, shape index: {}]
  %s2 = inlined_call_operand.vmem [shape: f32[1,8], index: 2, kind: input, shape index: {}]
  %s3 = inlined_call_operand.vmem [shape: f32[512,8], index: 3, kind: output, shape index: {}]
  %s4 = sld [smem:[#allocation0]]
  $region45: #{tpu_custom_call.1} parent=0
    _
  %s6 = ssub.s32 1, %s4
  %s7 = scalar_select 0, %s6, %s4
  loop: start=0, step=1, limit=4
  $region2: #{tpu_custom_call.1} parent=0 // loop_pre_header
    _
  $region3: #{tpu_custom_call.1} parent=0 // loop_header
    %s9 = sphi 0, %s13
    %p10 = scmp.ge.s32.totalorder %s9, 4
    %s19 = sphi 0, %s21
    %s22 = sphi 0, %s19
    %s23 = sphi 0, %s22
    %s39 = sphi 0, %s23
    %s43 = sphi 0, %s43
    %s45 = sphi 0, %s43
    %s46 = sphi 0, %s45
    %s60 = sphi 0, %s46
    %s64 = sphi 0, %s64
    %s66 = sphi 0, %s64
    %s67 = sphi 0, %s66
    %s81 = sphi 0, %s67
    %s87 = sphi 0, %s89
    %s90 = sphi 0, %s87
    %s91 = sphi 0, %s90
    %s107 = sphi 0, %s91
  $region4: #{tpu_custom_call.1} parent=0 // loop_header_branch
    %12 = sbr.rel (%p10) target = $region8
  $region5: #{tpu_custom_call.1} parent=0 // loop_body
    %s14 = ssub.s32 %s9, 1
    %s15 = ssub.s32 %s9, 2
    %s16 = sadd.s32 %s9, 1
    %s17 = ssub.s32 %s9, %s16
    %p18 = scmp.eq.s32.totalorder %s17, 0
    %s20 = sadd.s32 %s19, 1
    %s21 = scalar_select %p18, %s19, %s20
    %p24 = pneg %p18
    %p25 = scmp.eq.s32.totalorder %s9, 1
    %p26 = por %p24, %p25
    %p27 = scmp.ne.s32.totalorder %s19, %s22
    %p28 = scmp.eq.s32.totalorder %s9, 0
    %p29 = por %p27, %p28
    %p30 = scmp.ne.s32.totalorder %s19, %s22
    %p31 = scmp.eq.s32.totalorder %s14, 1
    %p32 = por %p30, %p31
    %p33 = scmp.ne.s32.totalorder %s22, %s23
    %p34 = scmp.eq.s32.totalorder %s14, 0
    %p35 = por %p33, %p34
    %p36 = scmp.ne.s32.totalorder %s22, %s23
    %p37 = scmp.eq.s32.totalorder %s15, 1
    %p38 = por %p36, %p37
    %p40 = scmp.ne.s32.totalorder %s23, %s39
    %p41 = scmp.eq.s32.totalorder %s15, 0
    %p42 = por %p40, %p41
    %s44 = sadd.s32 %s43, 1
    %p47 = scmp.eq.s32.totalorder %s9, 1
    %p48 = scmp.ne.s32.totalorder %s43, %s45
    %p49 = scmp.eq.s32.totalorder %s9, 0
    %p50 = por %p48, %p49
    %p51 = scmp.ne.s32.totalorder %s43, %s45
    %p52 = scmp.eq.s32.totalorder %s14, 1
    %p53 = por %p51, %p52
    %p54 = scmp.ne.s32.totalorder %s45, %s46
    %p55 = scmp.eq.s32.totalorder %s14, 0
    %p56 = por %p54, %p55
    %p57 = scmp.ne.s32.totalorder %s45, %s46
    %p58 = scmp.eq.s32.totalorder %s15, 1
    %p59 = por %p57, %p58
    %p61 = scmp.ne.s32.totalorder %s46, %s60
    %p62 = scmp.eq.s32.totalorder %s15, 0
    %p63 = por %p61, %p62
    %s65 = sadd.s32 %s64, 1
    %p68 = scmp.eq.s32.totalorder %s9, 1
    %p69 = scmp.ne.s32.totalorder %s64, %s66
    %p70 = scmp.eq.s32.totalorder %s9, 0
    %p71 = por %p69, %p70
    %p72 = scmp.ne.s32.totalorder %s64, %s66
    %p73 = scmp.eq.s32.totalorder %s14, 1
    %p74 = por %p72, %p73
    %p75 = scmp.ne.s32.totalorder %s66, %s67
    %p76 = scmp.eq.s32.totalorder %s14, 0
    %p77 = por %p75, %p76
    %p78 = scmp.ne.s32.totalorder %s66, %s67
    %p79 = scmp.eq.s32.totalorder %s15, 1
    %p80 = por %p78, %p79
    %p82 = scmp.ne.s32.totalorder %s67, %s81
    %p83 = scmp.eq.s32.totalorder %s15, 0
    %p84 = por %p82, %p83
    %s85 = ssub.s32 %s9, %s16
    %p86 = scmp.eq.s32.totalorder %s85, 0
    %s88 = sadd.s32 %s87, 1
    %s89 = scalar_select %p86, %s87, %s88
    %p92 = pneg %p86
    %p93 = scmp.eq.s32.totalorder %s9, 1
    %p94 = por %p92, %p93
    %p95 = scmp.ne.s32.totalorder %s87, %s90
    %p96 = scmp.eq.s32.totalorder %s9, 0
    %p97 = por %p95, %p96
    %p98 = scmp.ne.s32.totalorder %s87, %s90
    %p99 = scmp.eq.s32.totalorder %s14, 1
    %p100 = por %p98, %p99
    %p101 = scmp.ne.s32.totalorder %s90, %s91
    %p102 = scmp.eq.s32.totalorder %s14, 0
    %p103 = por %p101, %p102
    %p104 = scmp.ne.s32.totalorder %s90, %s91
    %p105 = scmp.eq.s32.totalorder %s15, 1
    %p106 = por %p104, %p105
    %p108 = scmp.ne.s32.totalorder %s91, %s107
    %p109 = scmp.eq.s32.totalorder %s15, 0
    %p110 = por %p108, %p109
    %p111 = scmp.le.s32.totalorder 1, %s9
    %p112 = scmp.lt.s32.totalorder %s9, 3
    %p113 = pnand %p111, %p112
    %p114 = pneg %p113
    // Predicated region
    $region9: #{tpu_custom_call.1} parent=5 // pred_check
      _
    $region10: #{tpu_custom_call.1} parent=5 // pred_check_branch
      %116 = sbr.rel (%p113) target = $region12
    $region11: #{tpu_custom_call.1} parent=5 // pred_region
      %s117 = ssub.s32 %s9, 1
      // Predicated region
      $region13: #{tpu_custom_call.1} parent=11 // pred_check
        %p118 = pneg %p56
      $region14: #{tpu_custom_call.1} parent=11 // pred_check_branch
        %120 = sbr.rel (%p118) target = $region16
      $region15: #{tpu_custom_call.1} parent=11 // pred_region
        _
      $region16: #{tpu_custom_call.1} parent=11 // pred_fallthru
        _
      // Predicated region
      $region17: #{tpu_custom_call.1} parent=11 // pred_check
        %p121 = pneg %p77
      $region18: #{tpu_custom_call.1} parent=11 // pred_check_branch
        %123 = sbr.rel (%p121) target = $region20
      $region19: #{tpu_custom_call.1} parent=11 // pred_region
        _
      $region20: #{tpu_custom_call.1} parent=11 // pred_fallthru
        _
    $region12: #{tpu_custom_call.1} parent=5 // pred_fallthru
      _
    %p124 = scmp.lt.s32.totalorder %s9, 2
    // Predicated region
    $region21: #{tpu_custom_call.1} parent=5 // pred_check
      %p125 = pneg %p124
    $region22: #{tpu_custom_call.1} parent=5 // pred_check_branch
      %127 = sbr.rel (%p125) target = $region24
    $region23: #{tpu_custom_call.1} parent=5 // pred_region
      // Predicated region
      $region25: #{tpu_custom_call.1} parent=23 // pred_check
        %p128 = pneg %p29
      $region26: #{tpu_custom_call.1} parent=23 // pred_check_branch
        %130 = sbr.rel (%p128) target = $region28
      $region27: #{tpu_custom_call.1} parent=23 // pred_region
        %s131 = smul.u32 32, %s9
        %p132 = scmp.lt.s32.totalorder %s131, 63
        %s133 = scalar_select %p132, %s131, 63
        %s134 = smul.addr %s133, 8
        %s135 = scalar_lea.vmem %s0, %s134
        %s136 = smul.u32 32, %s9
      $region28: #{tpu_custom_call.1} parent=23 // pred_fallthru
        _
    $region24: #{tpu_custom_call.1} parent=5 // pred_fallthru
      _
    %p137 = scmp.le.s32.totalorder 1, %s9
    %p138 = scmp.lt.s32.totalorder %s9, 3
    %p139 = pnand %p137, %p138
    %p140 = pneg %p139
    // Predicated region
    $region29: #{tpu_custom_call.1} parent=5 // pred_check
      _
    $region30: #{tpu_custom_call.1} parent=5 // pred_check_branch
      %142 = sbr.rel (%p139) target = $region32
    $region31: #{tpu_custom_call.1} parent=5 // pred_region
      %s143 = ssub.s32 %s9, 1
      %s144 = smul.u32 32, %s14
      %p145 = scmp.lt.s32.totalorder %s144, 63
      %s146 = scalar_select %p145, %s144, 63
      %s147 = smul.addr %s146, 8
      %s148 = scalar_lea.vmem %s0, %s147
      %p149 = pneg %p35
      %p150 = pneg %p32
      %p151 = pneg %p56
      %p152 = pneg %p53
      %p153 = pneg %p77
      %p154 = pneg %p74
      %p155 = pneg %p103
      %p156 = pneg %p100
      %s157 = smul.u32 32, %s14
      %p158 = scmp.lt.s32.totalorder %s157, 63
      %s159 = scalar_select %p158, %s157, 63
      %s160 = smul.addr %s159, 8
      %s161 = scalar_lea.vmem %s3, %s160
      %s162 = smul.u32 32, %s14
      %p163 = scmp.lt.s32.totalorder %s162, 63
      %s164 = scalar_select %p163, %s162, 63
      %s165 = smul.addr %s164, 8
      %s166 = scalar_lea.vmem %s0, %s165
      %s167 = smul.u32 32, %s14
      %s168 = smul.u32 32, %s14
      %p169 = scmp.lt.s32.totalorder %s168, 63
      %s170 = scalar_select %p169, %s168, 63
      %s171 = smul.addr %s170, 8
      %s172 = scalar_lea.vmem %s3, %s171
      %s173 = smul.u32 32, %s14
      %v174 = vld [vmem:[%s166] sm:$0xff]
      %v175 = vld [vmem:[%s166 + $0x8] sm:$0xff]
      %v176 = vld [vmem:[%s166 + $0x10] sm:$0xff]
      %v177 = vld [vmem:[%s166 + $0x18] sm:$0xff]
      %v178 = vld [vmem:[%s166 + $0x20] sm:$0xff]
      %v179 = vld [vmem:[%s166 + $0x28] sm:$0xff]
      %v180 = vld [vmem:[%s166 + $0x30] sm:$0xff]
      %v181 = vld [vmem:[%s166 + $0x38] sm:$0xff]
      %v182 = vld [vmem:[%s166 + $0x40] sm:$0xff]
      %v183 = vld [vmem:[%s166 + $0x48] sm:$0xff]
      %v184 = vld [vmem:[%s166 + $0x50] sm:$0xff]
      %v185 = vld [vmem:[%s166 + $0x58] sm:$0xff]
      %v186 = vld [vmem:[%s166 + $0x60] sm:$0xff]
      %v187 = vld [vmem:[%s166 + $0x68] sm:$0xff]
      %v188 = vld [vmem:[%s166 + $0x70] sm:$0xff]
      %v189 = vld [vmem:[%s166 + $0x78] sm:$0xff]
      %v190 = vld [vmem:[%s166 + $0x80] sm:$0xff]
      %v191 = vld [vmem:[%s166 + $0x88] sm:$0xff]
      %v192 = vld [vmem:[%s166 + $0x90] sm:$0xff]
      %v193 = vld [vmem:[%s166 + $0x98] sm:$0xff]
      %v194 = vld [vmem:[%s166 + $0xa0] sm:$0xff]
      %v195 = vld [vmem:[%s166 + $0xa8] sm:$0xff]
      %v196 = vld [vmem:[%s166 + $0xb0] sm:$0xff]
      %v197 = vld [vmem:[%s166 + $0xb8] sm:$0xff]
      %v198 = vld [vmem:[%s166 + $0xc0] sm:$0xff]
      %v199 = vld [vmem:[%s166 + $0xc8] sm:$0xff]
      %v200 = vld [vmem:[%s166 + $0xd0] sm:$0xff]
      %v201 = vld [vmem:[%s166 + $0xd8] sm:$0xff]
      %v202 = vld [vmem:[%s166 + $0xe0] sm:$0xff]
      %v203 = vld [vmem:[%s166 + $0xe8] sm:$0xff]
      %v204 = vld [vmem:[%s166 + $0xf0] sm:$0xff]
      %v205 = vld [vmem:[%s166 + $0xf8] sm:$0xff]
      %v206 = vld [vmem:[%s1] sm:$0xff]
      %v207 = vld [vmem:[%s1 + $0x8] sm:$0xff]
      %v208 = vld [vmem:[%s1 + $0x10] sm:$0xff]
      %v209 = vld [vmem:[%s1 + $0x18] sm:$0xff]
      %v210 = vld [vmem:[%s1 + $0x20] sm:$0xf]
      %v211 = vld [vmem:[%s2] sm:$0x1]
      %v213 = vlaneseq
      %v214 = vshrl.u32 %v213, 7
      %v215 = vsub.s32 0, %v214
      %v216 = vrot.slane %v211, %v215
      %vm218 = vcmask 293888
      %v220 = vsel %vm218, %v174, 0
      %v223 = vsel %vm218, %v175, 0
      %v226 = vsel %vm218, %v176, 0
      %v229 = vsel %vm218, %v177, 0
      %v232 = vsel %vm218, %v178, 0
      %v235 = vsel %vm218, %v179, 0
      %v238 = vsel %vm218, %v180, 0
      %v241 = vsel %vm218, %v181, 0
      %v244 = vsel %vm218, %v182, 0
      %v247 = vsel %vm218, %v183, 0
      %v250 = vsel %vm218, %v184, 0
      %v253 = vsel %vm218, %v185, 0
      %v256 = vsel %vm218, %v186, 0
      %v259 = vsel %vm218, %v187, 0
      %v262 = vsel %vm218, %v188, 0
      %v265 = vsel %vm218, %v189, 0
      %v268 = vsel %vm218, %v190, 0
      %v271 = vsel %vm218, %v191, 0
      %v274 = vsel %vm218, %v192, 0
      %v277 = vsel %vm218, %v193, 0
      %v280 = vsel %vm218, %v194, 0
      %v283 = vsel %vm218, %v195, 0
      %v286 = vsel %vm218, %v196, 0
      %v289 = vsel %vm218, %v197, 0
      %v292 = vsel %vm218, %v198, 0
      %v295 = vsel %vm218, %v199, 0
      %v298 = vsel %vm218, %v200, 0
      %v301 = vsel %vm218, %v201, 0
      %v304 = vsel %vm218, %v202, 0
      %v307 = vsel %vm218, %v203, 0
      %v310 = vsel %vm218, %v204, 0
      %v313 = vsel %vm218, %v205, 0
      %vm315 = vcmask 1043456
      %v317 = vsel %vm315, %v210, 0
      %319 = vmatprep.subr.mxu0 0.0
      %320 = vmatpush1.msra.mxu0 %v206
      %321 = vmatprep.subr.mxu0 0.0
      %322 = vmatpush1.msra.mxu0 %v207
      %323 = vmatprep.subr.mxu0 0.0
      %324 = vmatpush1.msra.mxu0 %v208
      %325 = vmatprep.subr.mxu0 0.0
      %326 = vmatpush1.msra.mxu0 %v209
      %327 = vmatprep.subr.mxu0 0.0
      %328 = vmatpush1.msra.mxu0 %v317
      %329 = vmatprep.subr.mxu0 0.0
      %330 = vmatpush1.msra.mxu0 0.0
      %331 = vmatprep.subr.mxu0 0.0
      %332 = vmatpush1.msra.mxu0 0.0
      %333 = vmatprep.subr.mxu0 0.0
      %334 = vmatpush1.msra.mxu0 0.0
      %335 = vmatprep.subr.mxu0 0.0
      %336 = vmatpush1.msra.mxu0 0.0
      %337 = vmatprep.subr.mxu0 0.0
      %338 = vmatpush1.msra.mxu0 0.0
      %339 = vmatprep.subr.mxu0 0.0
      %340 = vmatpush1.msra.mxu0 0.0
      %341 = vmatprep.subr.mxu0 0.0
      %342 = vmatpush1.msra.mxu0 0.0
      %343 = vmatprep.subr.mxu0 0.0
      %344 = vmatpush1.msra.mxu0 0.0
      %345 = vmatprep.subr.mxu0 0.0
      %346 = vmatpush1.msra.mxu0 0.0
      %347 = vmatprep.subr.mxu0 0.0
      %348 = vmatpush1.msra.mxu0 0.0
      %349 = vmatprep.subr.mxu0 0.0
      %350 = vmatpush1.msra.mxu0 0.0
      %351 = vmatprep.subr.mxu0 0.0
      %352 = vmatpush1.msra.mxu0 0.0
      %353 = vmatprep.subr.mxu0 0.0
      %354 = vmatpush1.msra.mxu0 0.0
      %355 = vmatprep.subr.mxu0 0.0
      %356 = vmatpush1.msra.mxu0 0.0
      %357 = vmatprep.subr.mxu0 0.0
      %358 = vmatpush1.msra.mxu0 0.0
      %359 = vmatprep.subr.mxu0 0.0
      %360 = vmatpush1.msra.mxu0 0.0
      %361 = vmatprep.subr.mxu0 0.0
      %362 = vmatpush1.msra.mxu0 0.0
      %363 = vmatprep.subr.mxu0 0.0
      %364 = vmatpush1.msra.mxu0 0.0
      %365 = vmatprep.subr.mxu0 0.0
      %366 = vmatpush1.msra.mxu0 0.0
      %367 = vmatprep.subr.mxu0 0.0
      %368 = vmatpush1.msra.mxu0 0.0
      %369 = vmatprep.subr.mxu0 0.0
      %370 = vmatpush1.msra.mxu0 0.0
      %371 = vmatprep.subr.mxu0 0.0
      %372 = vmatpush1.msra.mxu0 0.0
      %373 = vmatprep.subr.mxu0 0.0
      %374 = vmatpush1.msra.mxu0 0.0
      %375 = vmatprep.subr.mxu0 0.0
      %376 = vmatpush1.msra.mxu0 0.0
      %377 = vmatprep.subr.mxu0 0.0
      %378 = vmatpush1.msra.mxu0 0.0
      %379 = vmatprep.subr.mxu0 0.0
      %380 = vmatpush1.msra.mxu0 0.0
      %381 = vmatprep.subr.mxu0 0.0
      %382 = vmatpush1.msra.mxu0 0.0
      %383 = vmatprep.mubr.f32.mxu0 0.0
      %384 = vmatmul.mubr.f32.gmra.mrb[0].mxu0 %v220
      %v385 = vpop.f32.mrb[0].mxu0
      %v386 = vadd.f32 %v216, %v385
      %v387 = vpop.f32.mrb[0].mxu0
      %388 = vmatprep.mubr.f32.mxu0 0.0
      %389 = vmatmul.mubr.f32.gmra.mrb[0].mxu0 %v223
      %v390 = vpop.f32.mrb[0].mxu0
      %v391 = vadd.f32 %v216, %v390
      %v392 = vpop.f32.mrb[0].mxu0
      %393 = vmatprep.mubr.f32.mxu0 0.0
      %394 = vmatmul.mubr.f32.gmra.mrb[0].mxu0 %v226
      %v395 = vpop.f32.mrb[0].mxu0
      %v396 = vadd.f32 %v216, %v395
      %v397 = vpop.f32.mrb[0].mxu0
      %398 = vmatprep.mubr.f32.mxu0 0.0
      %399 = vmatmul.mubr.f32.gmra.mrb[0].mxu0 %v229
      %v400 = vpop.f32.mrb[0].mxu0
      %v401 = vadd.f32 %v216, %v400
      %v402 = vpop.f32.mrb[0].mxu0
      %403 = vmatprep.mubr.f32.mxu0 0.0
      %404 = vmatmul.mubr.f32.gmra.mrb[0].mxu0 %v232
      %v405 = vpop.f32.mrb[0].mxu0
      %v406 = vadd.f32 %v216, %v405
      %v407 = vpop.f32.mrb[0].mxu0
      %408 = vmatprep.mubr.f32.mxu0 0.0
      %409 = vmatmul.mubr.f32.gmra.mrb[0].mxu0 %v235
      %v410 = vpop.f32.mrb[0].mxu0
      %v411 = vadd.f32 %v216, %v410
      %v412 = vpop.f32.mrb[0].mxu0
      %413 = vmatprep.mubr.f32.mxu0 0.0
      %414 = vmatmul.mubr.f32.gmra.mrb[0].mxu0 %v238
      %v415 = vpop.f32.mrb[0].mxu0
      %v416 = vadd.f32 %v216, %v415
      %v417 = vpop.f32.mrb[0].mxu0
      %418 = vmatprep.mubr.f32.mxu0 0.0
      %419 = vmatmul.mubr.f32.gmra.mrb[0].mxu0 %v241
      %v420 = vpop.f32.mrb[0].mxu0
      %v421 = vadd.f32 %v216, %v420
      %v422 = vpop.f32.mrb[0].mxu0
      %423 = vmatprep.mubr.f32.mxu0 0.0
      %424 = vmatmul.mubr.f32.gmra.mrb[0].mxu0 %v244
      %v425 = vpop.f32.mrb[0].mxu0
      %v426 = vadd.f32 %v216, %v425
      %v427 = vpop.f32.mrb[0].mxu0
      %428 = vmatprep.mubr.f32.mxu0 0.0
      %429 = vmatmul.mubr.f32.gmra.mrb[0].mxu0 %v247
      %v430 = vpop.f32.mrb[0].mxu0
      %v431 = vadd.f32 %v216, %v430
      %v432 = vpop.f32.mrb[0].mxu0
      %433 = vmatprep.mubr.f32.mxu0 0.0
      %434 = vmatmul.mubr.f32.gmra.mrb[0].mxu0 %v250
      %v435 = vpop.f32.mrb[0].mxu0
      %v436 = vadd.f32 %v216, %v435
      %v437 = vpop.f32.mrb[0].mxu0
      %438 = vmatprep.mubr.f32.mxu0 0.0
      %439 = vmatmul.mubr.f32.gmra.mrb[0].mxu0 %v253
      %v440 = vpop.f32.mrb[0].mxu0
      %v441 = vadd.f32 %v216, %v440
      %v442 = vpop.f32.mrb[0].mxu0
      %443 = vmatprep.mubr.f32.mxu0 0.0
      %444 = vmatmul.mubr.f32.gmra.mrb[0].mxu0 %v256
      %v445 = vpop.f32.mrb[0].mxu0
      %v446 = vadd.f32 %v216, %v445
      %v447 = vpop.f32.mrb[0].mxu0
      %448 = vmatprep.mubr.f32.mxu0 0.0
      %449 = vmatmul.mubr.f32.gmra.mrb[0].mxu0 %v259
      %v450 = vpop.f32.mrb[0].mxu0
      %v451 = vadd.f32 %v216, %v450
      %v452 = vpop.f32.mrb[0].mxu0
      %453 = vmatprep.mubr.f32.mxu0 0.0
      %454 = vmatmul.mubr.f32.gmra.mrb[0].mxu0 %v262
      %v455 = vpop.f32.mrb[0].mxu0
      %v456 = vadd.f32 %v216, %v455
      %v457 = vpop.f32.mrb[0].mxu0
      %458 = vmatprep.mubr.f32.mxu0 0.0
      %459 = vmatmul.mubr.f32.gmra.mrb[0].mxu0 %v265
      %v460 = vpop.f32.mrb[0].mxu0
      %v461 = vadd.f32 %v216, %v460
      %v462 = vpop.f32.mrb[0].mxu0
      %463 = vmatprep.mubr.f32.mxu0 0.0
      %464 = vmatmul.mubr.f32.gmra.mrb[0].mxu0 %v268
      %v465 = vpop.f32.mrb[0].mxu0
      %v466 = vadd.f32 %v216, %v465
      %v467 = vpop.f32.mrb[0].mxu0
      %468 = vmatprep.mubr.f32.mxu0 0.0
      %469 = vmatmul.mubr.f32.gmra.mrb[0].mxu0 %v271
      %v470 = vpop.f32.mrb[0].mxu0
      %v471 = vadd.f32 %v216, %v470
      %v472 = vpop.f32.mrb[0].mxu0
      %473 = vmatprep.mubr.f32.mxu0 0.0
      %474 = vmatmul.mubr.f32.gmra.mrb[0].mxu0 %v274
      %v475 = vpop.f32.mrb[0].mxu0
      %v476 = vadd.f32 %v216, %v475
      %v477 = vpop.f32.mrb[0].mxu0
      %478 = vmatprep.mubr.f32.mxu0 0.0
      %479 = vmatmul.mubr.f32.gmra.mrb[0].mxu0 %v277
      %v480 = vpop.f32.mrb[0].mxu0
      %v481 = vadd.f32 %v216, %v480
      %v482 = vpop.f32.mrb[0].mxu0
      %483 = vmatprep.mubr.f32.mxu0 0.0
      %484 = vmatmul.mubr.f32.gmra.mrb[0].mxu0 %v280
      %v485 = vpop.f32.mrb[0].mxu0
      %v486 = vadd.f32 %v216, %v485
      %v487 = vpop.f32.mrb[0].mxu0
      %488 = vmatprep.mubr.f32.mxu0 0.0
      %489 = vmatmul.mubr.f32.gmra.mrb[0].mxu0 %v283
      %v490 = vpop.f32.mrb[0].mxu0
      %v491 = vadd.f32 %v216, %v490
      %v492 = vpop.f32.mrb[0].mxu0
      %493 = vmatprep.mubr.f32.mxu0 0.0
      %494 = vmatmul.mubr.f32.gmra.mrb[0].mxu0 %v286
      %v495 = vpop.f32.mrb[0].mxu0
      %v496 = vadd.f32 %v216, %v495
      %v497 = vpop.f32.mrb[0].mxu0
      %498 = vmatprep.mubr.f32.mxu0 0.0
      %499 = vmatmul.mubr.f32.gmra.mrb[0].mxu0 %v289
      %v500 = vpop.f32.mrb[0].mxu0
      %v501 = vadd.f32 %v216, %v500
      %v502 = vpop.f32.mrb[0].mxu0
      %503 = vmatprep.mubr.f32.mxu0 0.0
      %504 = vmatmul.mubr.f32.gmra.mrb[0].mxu0 %v292
      %v505 = vpop.f32.mrb[0].mxu0
      %v506 = vadd.f32 %v216, %v505
      %v507 = vpop.f32.mrb[0].mxu0
      %508 = vmatprep.mubr.f32.mxu0 0.0
      %509 = vmatmul.mubr.f32.gmra.mrb[0].mxu0 %v295
      %v510 = vpop.f32.mrb[0].mxu0
      %v511 = vadd.f32 %v216, %v510
      %v512 = vpop.f32.mrb[0].mxu0
      %513 = vmatprep.mubr.f32.mxu0 0.0
      %514 = vmatmul.mubr.f32.gmra.mrb[0].mxu0 %v298
      %v515 = vpop.f32.mrb[0].mxu0
      %v516 = vadd.f32 %v216, %v515
      %v517 = vpop.f32.mrb[0].mxu0
      %518 = vmatprep.mubr.f32.mxu0 0.0
      %519 = vmatmul.mubr.f32.gmra.mrb[0].mxu0 %v301
      %v520 = vpop.f32.mrb[0].mxu0
      %v521 = vadd.f32 %v216, %v520
      %v522 = vpop.f32.mrb[0].mxu0
      %523 = vmatprep.mubr.f32.mxu0 0.0
      %524 = vmatmul.mubr.f32.gmra.mrb[0].mxu0 %v304
      %v525 = vpop.f32.mrb[0].mxu0
      %v526 = vadd.f32 %v216, %v525
      %v527 = vpop.f32.mrb[0].mxu0
      %528 = vmatprep.mubr.f32.mxu0 0.0
      %529 = vmatmul.mubr.f32.gmra.mrb[0].mxu0 %v307
      %v530 = vpop.f32.mrb[0].mxu0
      %v531 = vadd.f32 %v216, %v530
      %v532 = vpop.f32.mrb[0].mxu0
      %533 = vmatprep.mubr.f32.mxu0 0.0
      %534 = vmatmul.mubr.f32.gmra.mrb[0].mxu0 %v310
      %v535 = vpop.f32.mrb[0].mxu0
      %v536 = vadd.f32 %v216, %v535
      %v537 = vpop.f32.mrb[0].mxu0
      %538 = vmatprep.mubr.f32.mxu0 0.0
      %539 = vmatmul.mubr.f32.gmra.mrb[0].mxu0 %v313
      %v540 = vpop.f32.mrb[0].mxu0
      %v541 = vadd.f32 %v216, %v540
      %v542 = vpop.f32.mrb[0].mxu0
      %543 = vdwg.mxu0
      %vm544 = vcmask 64512
      %545 = vst.msk [vmem:[%s172] sm:$0xff] %vm544, %v386
      %546 = vst.msk [vmem:[%s172 + $0x8] sm:$0xff] %vm544, %v391
      %547 = vst.msk [vmem:[%s172 + $0x10] sm:$0xff] %vm544, %v396
      %548 = vst.msk [vmem:[%s172 + $0x18] sm:$0xff] %vm544, %v401
      %549 = vst.msk [vmem:[%s172 + $0x20] sm:$0xff] %vm544, %v406
      %550 = vst.msk [vmem:[%s172 + $0x28] sm:$0xff] %vm544, %v411
      %551 = vst.msk [vmem:[%s172 + $0x30] sm:$0xff] %vm544, %v416
      %552 = vst.msk [vmem:[%s172 + $0x38] sm:$0xff] %vm544, %v421
      %553 = vst.msk [vmem:[%s172 + $0x40] sm:$0xff] %vm544, %v426
      %554 = vst.msk [vmem:[%s172 + $0x48] sm:$0xff] %vm544, %v431
      %555 = vst.msk [vmem:[%s172 + $0x50] sm:$0xff] %vm544, %v436
      %556 = vst.msk [vmem:[%s172 + $0x58] sm:$0xff] %vm544, %v441
      %557 = vst.msk [vmem:[%s172 + $0x60] sm:$0xff] %vm544, %v446
      %558 = vst.msk [vmem:[%s172 + $0x68] sm:$0xff] %vm544, %v451
      %559 = vst.msk [vmem:[%s172 + $0x70] sm:$0xff] %vm544, %v456
      %560 = vst.msk [vmem:[%s172 + $0x78] sm:$0xff] %vm544, %v461
      %561 = vst.msk [vmem:[%s172 + $0x80] sm:$0xff] %vm544, %v466
      %562 = vst.msk [vmem:[%s172 + $0x88] sm:$0xff] %vm544, %v471
      %563 = vst.msk [vmem:[%s172 + $0x90] sm:$0xff] %vm544, %v476
      %564 = vst.msk [vmem:[%s172 + $0x98] sm:$0xff] %vm544, %v481
      %565 = vst.msk [vmem:[%s172 + $0xa0] sm:$0xff] %vm544, %v486
      %566 = vst.msk [vmem:[%s172 + $0xa8] sm:$0xff] %vm544, %v491
      %567 = vst.msk [vmem:[%s172 + $0xb0] sm:$0xff] %vm544, %v496
      %568 = vst.msk [vmem:[%s172 + $0xb8] sm:$0xff] %vm544, %v501
      %569 = vst.msk [vmem:[%s172 + $0xc0] sm:$0xff] %vm544, %v506
      %570 = vst.msk [vmem:[%s172 + $0xc8] sm:$0xff] %vm544, %v511
      %571 = vst.msk [vmem:[%s172 + $0xd0] sm:$0xff] %vm544, %v516
      %572 = vst.msk [vmem:[%s172 + $0xd8] sm:$0xff] %vm544, %v521
      %573 = vst.msk [vmem:[%s172 + $0xe0] sm:$0xff] %vm544, %v526
      %574 = vst.msk [vmem:[%s172 + $0xe8] sm:$0xff] %vm544, %v531
      %575 = vst.msk [vmem:[%s172 + $0xf0] sm:$0xff] %vm544, %v536
      %576 = vst.msk [vmem:[%s172 + $0xf8] sm:$0xff] %vm544, %v541
      %s577 = smul.u32 32, %s14
      %p578 = scmp.lt.s32.totalorder %s577, 63
      %s579 = scalar_select %p578, %s577, 63
      %s580 = smul.addr %s579, 8
      %s581 = scalar_lea.vmem %s3, %s580
      // Predicated region
      $region33: #{tpu_custom_call.1} parent=31 // pred_check
        %p582 = pneg %p100
      $region34: #{tpu_custom_call.1} parent=31 // pred_check_branch
        %584 = sbr.rel (%p582) target = $region36
      $region35: #{tpu_custom_call.1} parent=31 // pred_region
        %s585 = smul.u32 32, %s14
      $region36: #{tpu_custom_call.1} parent=31 // pred_fallthru
        _
    $region32: #{tpu_custom_call.1} parent=5 // pred_fallthru
      _
    %p586 = scmp.le.s32.totalorder 2, %s9
    // Predicated region
    $region37: #{tpu_custom_call.1} parent=5 // pred_check
      %p587 = pneg %p586
    $region38: #{tpu_custom_call.1} parent=5 // pred_check_branch
      %589 = sbr.rel (%p587) target = $region40
    $region39: #{tpu_custom_call.1} parent=5 // pred_region
      %s590 = ssub.s32 %s9, 2
      // Predicated region
      $region41: #{tpu_custom_call.1} parent=39 // pred_check
        %p591 = pneg %p106
      $region42: #{tpu_custom_call.1} parent=39 // pred_check_branch
        %593 = sbr.rel (%p591) target = $region44
      $region43: #{tpu_custom_call.1} parent=39 // pred_region
        %s594 = smul.u32 32, %s15
        %p595 = scmp.lt.s32.totalorder %s594, 63
        %s596 = scalar_select %p595, %s594, 63
        %s597 = smul.addr %s596, 8
        %s598 = scalar_lea.vmem %s3, %s597
      $region44: #{tpu_custom_call.1} parent=39 // pred_fallthru
        _
    $region40: #{tpu_custom_call.1} parent=5 // pred_fallthru
      _
  $region6: #{tpu_custom_call.1} parent=0 // loop_footer
    %s13 = sadd.s32 1, %s9
  $region7: #{tpu_custom_call.1} parent=0 // loop_footer_branch
    %8 = sbr.rel target = $region3
  $region8: #{tpu_custom_call.1} parent=0 // loop_exit
    _

</llo_original>
